<compile_context>
chip_gen: v5e
topology: v5e:2x2
jax: 0.10.0
libtpu: 0.0.40
codegen_flags: <defaults>
</compile_context>

<pallas_src>
import functools
import math

import jax
import jax.numpy as jnp
from jax.experimental import pallas as pl
from jax.experimental.pallas import tpu as pltpu

LANE = 128
SUBLANE = 8
TARGET_BLOCK_BYTES = 2 * 1024 * 1024   # ~2 MiB per VMEM buffer (safe on v5e/v6e/v7x)
MIN_GRID_STEPS = 4                      # let v7x megacore shard the row axis
SMALL_INPUT_ELEMS = 256 * 1024          # below this, plain XLA add wins


def _round_up(a: int, b: int) -> int:
    return ((a + b - 1) // b) * b


def _pick_lanes(n_aligned: int) -> int:
    """Widest lane-dense width (multiple of 128) that divides the aligned size."""
    for lanes in (1024, 512, 256, 128):
        if n_aligned % lanes == 0:
            return lanes
    raise ValueError("n_aligned must be a multiple of 128")


def _bias_add_kernel(x_ref, o_ref, *, bias):
    # `bias` is a Python float closed over at trace time -> folded into the
    # VPU add as an immediate constant (weak-typed: result keeps x's dtype).
    o_ref[...] = (x_ref[...] + bias).astype(o_ref.dtype)


def _bias_add_2d(x2d: jax.Array, bias: float, donate: bool) -> jax.Array:
    rows, lanes = x2d.shape
    itemsize = jnp.dtype(x2d.dtype).itemsize

    if rows <= SUBLANE:
        tr = rows                                   # single full-extent block
    else:
        # ~2 MiB blocks regardless of dtype, but keep >= MIN_GRID_STEPS grid
        # steps so both v7x TensorCores get work on mid-size inputs.
        tr_bytes = max(
            SUBLANE,
            (TARGET_BLOCK_BYTES // (lanes * itemsize)) // SUBLANE * SUBLANE)
        tr_split = _round_up(pl.cdiv(rows, MIN_GRID_STEPS), SUBLANE)
        tr = max(SUBLANE, min(tr_bytes, tr_split))

    grid = (pl.cdiv(rows, tr),)                     # partial last block is masked

    return pl.pallas_call(
        functools.partial(_bias_add_kernel, bias=bias),
        out_shape=jax.ShapeDtypeStruct((rows, lanes), x2d.dtype),
        grid_spec=pl.GridSpec(
            grid=grid,
            in_specs=[pl.BlockSpec((tr, lanes), lambda i: (i, 0))],
            out_specs=pl.BlockSpec((tr, lanes), lambda i: (i, 0)),
        ),
        # Only alias when the caller guarantees the input is donatable;
        # otherwise XLA inserts a defensive full copy (an extra HBM pass).
        input_output_aliases=({0: 0} if donate else {}),
        compiler_params=pltpu.CompilerParams(
            dimension_semantics=("parallel",),
        ),
    )(x2d)


def global_bias_add(x: jax.Array, global_bias: float, *, donate: bool = False,
                    min_pallas_elems: int = SMALL_INPUT_ELEMS) -> jax.Array:
    """Elementwise `x + global_bias` (GlobalBiasAdd.forward) via Pallas."""
    orig_shape = x.shape
    dtype = x.dtype
    n = math.prod(orig_shape)
    bias = float(global_bias)

    # Tiny / empty / non-float inputs: a plain XLA add is faster (no kernel
    # dispatch or pipeline prologue) and keeps exact `inputs + scalar`
    # promotion semantics.
    if (n < max(1, min_pallas_elems) or n < LANE
            or not jnp.issubdtype(dtype, jnp.floating)):
        return x + bias

    flat = x.reshape(-1)                            # free: x is contiguous
    rem = n % LANE
    n_main = n - rem

    lanes = _pick_lanes(n_main)
    main2d = flat[:n_main].reshape(n_main // lanes, lanes)
    out_main = _bias_add_2d(main2d, bias, donate).reshape(-1)

    if rem == 0:
        return out_main.reshape(orig_shape)

    # Ragged tail (< 128 elements): plain jnp add, then stitch it back on.
    tail = flat[n_main:] + bias
    return jnp.concatenate([out_main, tail]).reshape(orig_shape)


if __name__ == "__main__":
    key = jax.random.PRNGKey(0)
    global_bias = 0.37   # the module's static scalar

    # Small NCHW activation consistent with the module's forward; force the
    # Pallas path (the default small-input bypass would use plain XLA here).
    x = jax.random.normal(key, (2, 4, 16, 16), dtype=jnp.float32)
    out = jax.block_until_ready(
        global_bias_add(x, global_bias, min_pallas_elems=0))
    assert out.shape == x.shape and out.dtype == x.dtype
    assert jnp.allclose(out, x + global_bias, atol=1e-6)

    k1, k2, k3 = jax.random.split(key, 3)

    # 128-aligned but not 1024-aligned -> zero-copy path, lanes=128,
    # masked partial last row-block (rows=15, tr=8, grid=2).
    x2 = jax.random.normal(k1, (5, 384), dtype=jnp.float32)
    out2 = jax.block_until_ready(
        global_bias_add(x2, global_bias, min_pallas_elems=0))
    assert jnp.allclose(out2, x2 + global_bias, atol=1e-6)

    # Ragged size -> aligned-prefix kernel + jnp tail + tiny concat.
    x3 = jax.random.normal(k2, (3, 5, 7, 11), dtype=jnp.float32)  # 1155 elems
    out3 = jax.block_until_ready(
        global_bias_add(x3, global_bias, min_pallas_elems=0))
    assert jnp.allclose(out3, x3 + global_bias, atol=1e-6)

    # bf16 input: block bytes stay ~2 MiB via itemsize scaling; result dtype
    # follows the input (weak-typed scalar), matching `inputs + scalar`.
    x4 = jax.random.normal(k3, (2, 8, 16, 16), dtype=jnp.bfloat16)
    out4 = jax.block_until_ready(
        global_bias_add(x4, global_bias, min_pallas_elems=0))
    assert out4.dtype == jnp.bfloat16
    assert jnp.allclose(out4.astype(jnp.float32),
                        (x4 + global_bias).astype(jnp.float32), atol=1e-2)

    # Tiny input takes the default bypass path (plain XLA add).
    x5 = jax.random.normal(key, (3, 5, 7), dtype=jnp.float32)
    out5 = jax.block_until_ready(global_bias_add(x5, global_bias))
    assert jnp.allclose(out5, x5 + global_bias, atol=1e-6)

    print("KERNEL_OK")
</pallas_src>

<mosaic_0001>
module attributes {stable_mosaic.version = 11 : i64} {
  func.func @_bias_add_kernel(%arg0: i32, %arg1: memref<2x1024xf32, #tpu.memory_space<vmem>>, %arg2: memref<2x1024xf32, #tpu.memory_space<vmem>>) attributes {dimension_semantics = [#tpu.dimension_semantics<parallel>], iteration_bounds = array<i64: 1>, scalar_prefetch = 0 : i64, scratch_operands = 0 : i64, tpu.core_type = #tpu.core_type<tc>, window_params = [{transform_indices = @transform_0, window_bounds = array<i64: 2, 1024>}, {transform_indices = @transform_1, window_bounds = array<i64: 2, 1024>}]} {
    %c0 = arith.constant 0 : index
    %c0_0 = arith.constant 0 : index
    %0 = vector.load %arg1[%c0, %c0_0] : memref<2x1024xf32, #tpu.memory_space<vmem>>, vector<2x1024xf32>
    %cst = arith.constant 3.700000e-01 : f32
    %1 = vector.broadcast %cst : f32 to vector<2x1024xf32>
    %2 = arith.addf %0, %1 : vector<2x1024xf32>
    %c0_1 = arith.constant 0 : index
    %c0_2 = arith.constant 0 : index
    %3 = vector.load %arg2[%c0_1, %c0_2] : memref<2x1024xf32, #tpu.memory_space<vmem>>, vector<2x1024xf32>
    tpu.vector_store %arg2[%c0_1, %c0_2], %2 {strides = array<i32>} : memref<2x1024xf32, #tpu.memory_space<vmem>>, vector<2x1024xf32>,
    return
  }
  func.func @transform_0(%arg0: i32) -> (i32, i32) {
    %c0_i32 = arith.constant 0 : i32
    %c0_i32_0 = arith.constant 0 : i32
    return %arg0, %c0_i32 : i32, i32
  }
  func.func @transform_1(%arg0: i32) -> (i32, i32) {
    %c0_i32 = arith.constant 0 : i32
    %c0_i32_0 = arith.constant 0 : i32
    return %arg0, %c0_i32 : i32, i32
  }
}

</mosaic_0001>

<llo_original>
// kernel: tpu_custom_call.1
$region0: #{tpu_custom_call.1}
  #allocation0 [shape = 'u32[]', space=smem, size = 0x4, offset = 0x4, fixed_abs, tag = 'smem constant byte address 0x4 - core index']
  #allocation1 [shape = 'u32[72,128]{1,0:T(1,128)}', space=vmem, size = 0x9000, scoped, tag = 'internal scratch']
  %s0 = inlined_call_operand.hbm [shape: f32[2,1024], index: 0, kind: input, shape index: {}]
  %s1 = inlined_call_operand.hbm [shape: f32[2,1024], index: 1, kind: output, shape index: {}]
  %s2 = sld [smem:[#allocation0]]
  $region18: #{tpu_custom_call.1} parent=0
    _
  %s4 = ssub.s32 1, %s2
  %s5 = scalar_select 0, %s4, %s2
  $region1: #{tpu_custom_call.1} parent=0
    #allocation2 [shape = 'u8[8192]{0}', space=vmem, size = 0x2000, scoped, tag = 'input window, operand 0, single buffered']
    #allocation3 [shape = 's32[1]{0}', space=sflag, size = 0x4, scoped, tag = 'scoped memory for tpu_custom_call.1']
    #allocation4 [shape = 's32[1]{0}', space=sflag, size = 0x4, scoped, tag = 'scoped memory for tpu_custom_call.1']
    #allocation5 [shape = 'u8[8192]{0}', space=vmem, size = 0x2000, scoped, tag = 'output window, operand 0, single buffered']
    %6 = vsyncpa [#allocation3], 0
    %7 = vsyncpa [#allocation4], 0
    // Predicated region
    $region2: #{tpu_custom_call.1} parent=1 // pred_check
      _
    $region3: #{tpu_custom_call.1} parent=1 // pred_check_branch
      %9 = sbr.rel (0) target = $region5
    $region4: #{tpu_custom_call.1} parent=1 // pred_region
      %11 = vsyncadd [#allocation3], 0
      %s13 = sshll.u32 %s0, 4
      %s14 = int_to_ptr.hbm [resolvable:$true] %s13
      %s15 = sshll.u32 [#allocation2], 4
      %s16 = int_to_ptr.vmem [resolvable:$true] %s15
      %18 = dma.hbm_to_vmem [thread:$0]  %s14, 256, %s16, [#allocation3]
    $region5: #{tpu_custom_call.1} parent=1 // pred_fallthru
      _
    // Predicated region
    $region6: #{tpu_custom_call.1} parent=1 // pred_check
      _
    $region7: #{tpu_custom_call.1} parent=1 // pred_check_branch
      %20 = sbr.rel (0) target = $region9
    $region8: #{tpu_custom_call.1} parent=1 // pred_region
      %22 = dma.done [#allocation3], 256
    $region9: #{tpu_custom_call.1} parent=1 // pred_fallthru
      _
    %v23 = vld [vmem:[#allocation2] sm:$0xff]
    %v24 = vld [vmem:[#allocation2 + $0x8] sm:$0xff]
    %v25 = vadd.f32 %v23, 0.37
    %v26 = vadd.f32 %v24, 0.37
    %27 = vst [vmem:[#allocation5] sm:$0xff] %v25
    %28 = vst [vmem:[#allocation5 + $0x8] sm:$0xff] %v26
    // Predicated region
    $region10: #{tpu_custom_call.1} parent=1 // pred_check
      _
    $region11: #{tpu_custom_call.1} parent=1 // pred_check_branch
      %30 = sbr.rel (0) target = $region13
    $region12: #{tpu_custom_call.1} parent=1 // pred_region
      %32 = vsyncadd [#allocation4], 0
      %s34 = sshll.u32 [#allocation5], 4
      %s35 = int_to_ptr.vmem [resolvable:$true] %s34
      %s36 = sshll.u32 %s1, 4
      %s37 = int_to_ptr.hbm [resolvable:$true] %s36
      %39 = dma.vmem_to_hbm [thread:$0]  %s35, 256, %s37, [#allocation4]
    $region13: #{tpu_custom_call.1} parent=1 // pred_fallthru
      _
    // Predicated region
    $region14: #{tpu_custom_call.1} parent=1 // pred_check
      _
    $region15: #{tpu_custom_call.1} parent=1 // pred_check_branch
      %41 = sbr.rel (0) target = $region17
    $region16: #{tpu_custom_call.1} parent=1 // pred_region
      %43 = dma.done [#allocation4], 256
    $region17: #{tpu_custom_call.1} parent=1 // pred_fallthru
      _
    %44 = vsyncpa [#allocation3], 1
    %45 = vsyncpa [#allocation4], 1

</llo_original>
